<compile_context>
chip_gen: v5e
topology: v5e:2x2
jax: 0.10.0
libtpu: 0.0.40
codegen_flags: <defaults>
</compile_context>

<pallas_src>
import functools

import jax
import jax.numpy as jnp
from jax import lax
from jax.experimental import pallas as pl
from jax.experimental.pallas import tpu as pltpu


def spatial_kernel(x_ref, w1_ref, masks_ref, b1_ref, w2_ref, b2_ref, o_ref,
                   *, W, Nb):
    HWp = x_ref.shape[2]
    # Off-center 3x3 taps; tap t uses weight w2_ref[3*(a+1)+(b+1)] and the
    # combined edge-validity mask masks_ref[t].
    taps = ((-1, -1), (-1, 0), (-1, 1), (0, -1), (0, 1), (1, -1), (1, 0), (1, 1))

    for n in range(Nb):                        # static unroll over the batch tile
        # ---- conv1: 1x1 (C->1) + bias + ReLU (one MXU pass) -----------------
        # w1_ref is (8, C): row 0 holds the real weights, rows 1..7 are zero;
        # the garbage in sublanes 1..7 of s / att never reaches the output.
        # (For bit-parity with fp32 PyTorch pass precision=lax.Precision.HIGHEST;
        #  default matches the JAX reference and is well within tolerance.)
        s = jnp.dot(w1_ref[...], x_ref[n], preferred_element_type=jnp.float32)
        s = jnp.maximum(s + b1_ref[0], 0.0)    # (8, HWp)

        # ---- conv2: 3x3 (1->1), padding=1, + bias -----------------------------
        # Flat layout: neighbor (r+a, c+b) of pixel k=r*W+c is s[k + a*W + b]
        # when in bounds, i.e. a static lane roll of s; wrap-around / padded
        # lanes are killed by the precomputed per-tap masks. Seed the
        # accumulator with the always-valid center tap + bias.
        acc = w2_ref[4] * s + b2_ref[0]
        for t, (a, b) in enumerate(taps):
            d = a * W + b                      # flat shift of this tap
            shifted = pltpu.roll(s, (-d) % HWp, axis=1)
            acc = acc + (w2_ref[3 * (a + 1) + (b + 1)] * shifted) \
                        * masks_ref[t:t + 1, :]
        att = jax.nn.sigmoid(acc)[0:1, :]      # (1, HWp)

        # ---- spatial gating: x * att, broadcast over channels (sublanes) ----
        # Re-read x_ref here instead of keeping the tile live across conv2.
        o_ref[n] = (x_ref[n] * att).astype(o_ref.dtype)


def _pick_batch_tile(N, per_batch_block_bytes, target_bytes=2 << 20):
    """Largest divisor of N giving ~target-sized blocks and >=2 grid steps."""
    nb = max(1, int(target_bytes // max(1, per_batch_block_bytes)))
    if N >= 2:
        nb = min(nb, N // 2)   # keep >= 2 "parallel" steps for v7x's 2 TCs
    nb = max(1, min(nb, N))
    while N % nb != 0:
        nb -= 1
    return nb


def spatial_forward(x_nchw, w1, b1, w2, b2, *, donate_x=False):
    """x_nchw: (N, 256, H, W) f32; returns (N, 256, H, W)."""
    N, C, H, W = x_nchw.shape
    HW = H * W
    HWp = ((HW + 127) // 128) * 128            # lane-pad flat spatial axis

    x = x_nchw.reshape(N, C, HW)               # free view (no transpose)
    if HWp != HW:
        x = jnp.pad(x, ((0, 0), (0, 0), (0, HWp - HW)))

    # conv1 weight padded to an MXU-friendly (8, C); row 0 holds the weights.
    w1p = jnp.zeros((8, C), w1.dtype).at[0].set(w1)
    # 1-D SMEM operand (pads to 64 B instead of a (8,128)-word 2-D tile).
    w2f = w2.reshape(9)

    # Combined (row & col) edge-validity masks for the 8 off-center taps.
    r = jnp.arange(HWp, dtype=jnp.int32) // W
    c = jnp.arange(HWp, dtype=jnp.int32) % W
    row_ok = {-1: r > 0, 0: jnp.ones((HWp,), bool), 1: r < H - 1}
    col_ok = {-1: c > 0, 0: jnp.ones((HWp,), bool), 1: c < W - 1}
    taps = ((-1, -1), (-1, 0), (-1, 1), (0, -1), (0, 1), (1, -1), (1, 0), (1, 1))
    masks = jnp.stack([row_ok[a] & col_ok[b] for a, b in taps]).astype(jnp.float32)

    # ---- batch tiling: ~1-2 MiB blocks, >=2 grid steps when possible --------
    per_batch_bytes = C * HWp * 4
    Nb = _pick_batch_tile(N, per_batch_bytes)
    grid = (N // Nb,)

    # Scoped-VMEM budget: double-buffered x-in + out blocks, plus the small
    # resident (masks, w1p) operands, plus headroom. Floor 32 MiB (>= default
    # on all gens), ceiling 48 MiB (safe inside v7x's 64 MiB physical VMEM).
    block_bytes = Nb * per_batch_bytes
    vmem_need = 2 * (2 * block_bytes) + 2 * 4 * (masks.size + w1p.size)
    vmem_limit = int(min(48 << 20, max(vmem_need + (2 << 20), 32 << 20)))

    # Advisory cost estimate: this call is memory bound (~2 flops/byte).
    cost = pl.CostEstimate(
        flops=int(N * HWp * (16 * C + C + 40)),
        transcendentals=int(8 * N * HWp),
        bytes_accessed=int(2 * N * C * HWp * 4 + 4 * (masks.size + w1p.size + 11)),
    )

    kernel = functools.partial(spatial_kernel, W=W, Nb=Nb)
    out = pl.pallas_call(
        kernel,
        out_shape=jax.ShapeDtypeStruct((N, C, HWp), x.dtype),
        grid=grid,
        in_specs=[
            pl.BlockSpec((Nb, C, HWp), lambda i: (i, 0, 0)),      # x
            pl.BlockSpec((8, C), lambda i: (0, 0)),               # w1 (padded)
            pl.BlockSpec((8, HWp), lambda i: (0, 0)),             # tap masks
            pl.BlockSpec(memory_space=pltpu.MemorySpace.SMEM),    # b1 (1,)
            pl.BlockSpec(memory_space=pltpu.MemorySpace.SMEM),    # w2 (9,)
            pl.BlockSpec(memory_space=pltpu.MemorySpace.SMEM),    # b2 (1,)
        ],
        out_specs=pl.BlockSpec((Nb, C, HWp), lambda i: (i, 0, 0)),
        # Batch tiles are independent; "parallel" lets v7x shard the grid
        # across its two TensorCores (no effect on single-TC v5e/v6e).
        compiler_params=pltpu.CompilerParams(
            dimension_semantics=("parallel",),
            vmem_limit_bytes=vmem_limit),
        cost_estimate=cost,
        # When x is dead after this op, donate it so the gate writes in place.
        input_output_aliases=({0: 0} if donate_x else {}),
    )(x, w1p, masks, b1, w2f, b2)

    out = out[:, :, :HW]                       # drop the lane-padding tail
    return out.reshape(N, C, H, W)


def spatial_reference(x_nchw, w1, b1, w2, b2):
    """Plain-JAX reference matching the PyTorch module semantics."""
    s = jnp.einsum('nchw,c->nhw', x_nchw, w1) + b1[0]
    s = jnp.maximum(s, 0.0)[:, None, :, :]      # (N,1,H,W)
    out = lax.conv_general_dilated(
        s, w2.reshape(1, 1, 3, 3), window_strides=(1, 1),
        padding=((1, 1), (1, 1)),
        dimension_numbers=('NCHW', 'OIHW', 'NCHW')) + b2[0]
    att = jax.nn.sigmoid(out)                   # (N,1,H,W)
    return x_nchw * att


def _run_case(key, N, C, H, W):
    k1, k2, k3, k4, k5 = jax.random.split(key, 5)
    x = jax.random.normal(k1, (N, C, H, W), jnp.float32)
    # Deterministic synthetic params (conv1: (1,C,1,1)+bias, conv2: (1,1,3,3)+bias)
    w1 = jax.random.normal(k2, (C,), jnp.float32) * 0.05
    b1 = jax.random.normal(k3, (1,), jnp.float32) * 0.05
    w2 = jax.random.normal(k4, (3, 3), jnp.float32) * 0.2
    b2 = jax.random.normal(k5, (1,), jnp.float32) * 0.1

    y = spatial_forward(x, w1, b1, w2, b2)
    jax.block_until_ready(y)

    y_ref = spatial_reference(x, w1, b1, w2, b2)
    err = float(jnp.max(jnp.abs(y - y_ref)))
    assert jnp.allclose(y, y_ref, atol=1e-4, rtol=1e-4), \
        f"case N={N} H={H} W={W}: max abs err = {err}"


if __name__ == "__main__":
    key = jax.random.PRNGKey(0)
    # ConvModule(in_channels=256, ...) hardwires C=256; keep spatial maps small.
    cases = [
        (2, 256, 16, 16),   # HW multiple of 128; Nb=1, grid=(2,) (v7x megacore)
        (8, 256, 16, 16),   # exercises batch tiling (Nb=4, ~1 MiB blocks)
        (2, 256, 10, 10),   # HW=100 -> lane-padded to 128, tail masked/sliced
    ]
    for idx, (N, C, H, W) in enumerate(cases):
        _run_case(jax.random.fold_in(key, idx), N, C, H, W)

    print("KERNEL_OK")
</pallas_src>

<mosaic_0001>
module attributes {stable_mosaic.version = 11 : i64} {
  func.func @spatial_kernel(%arg0: i32, %arg1: memref<1x256x256xf32, #tpu.memory_space<vmem>>, %arg2: memref<8x256xf32, #tpu.memory_space<vmem>>, %arg3: memref<8x256xf32, #tpu.memory_space<vmem>>, %arg4: memref<1xf32, #tpu.memory_space<smem>>, %arg5: memref<9xf32, #tpu.memory_space<smem>>, %arg6: memref<1xf32, #tpu.memory_space<smem>>, %arg7: memref<1x256x256xf32, #tpu.memory_space<vmem>>) attributes {dimension_semantics = [#tpu.dimension_semantics<parallel>], iteration_bounds = array<i64: 2>, scalar_prefetch = 0 : i64, scratch_operands = 0 : i64, tpu.core_type = #tpu.core_type<tc>, window_params = [{transform_indices = @transform_0, window_bounds = array<i64: 1, 256, 256>}, {pipeline_mode = #tpu.pipeline_mode<synchronous>, transform_indices = @transform_1, window_bounds = array<i64: 8, 256>}, {pipeline_mode = #tpu.pipeline_mode<synchronous>, transform_indices = @transform_2, window_bounds = array<i64: 8, 256>}, {transform_indices = @transform_3, window_bounds = array<i64: 1>}, {transform_indices = @transform_4, window_bounds = array<i64: 9>}, {transform_indices = @transform_5, window_bounds = array<i64: 1>}, {transform_indices = @transform_6, window_bounds = array<i64: 1, 256, 256>}]} {
    %c0 = arith.constant 0 : index
    %c0_0 = arith.constant 0 : index
    %0 = vector.load %arg2[%c0, %c0_0] : memref<8x256xf32, #tpu.memory_space<vmem>>, vector<8x256xf32>
    %c0_1 = arith.constant 0 : index
    %c0_2 = arith.constant 0 : index
    %c0_3 = arith.constant 0 : index
    %1 = vector.load %arg1[%c0_1, %c0_2, %c0_3] : memref<1x256x256xf32, #tpu.memory_space<vmem>>, vector<1x256x256xf32>
    %2 = vector.shape_cast %1 : vector<1x256x256xf32> to vector<256x256xf32>
    %cst = arith.constant dense<0.000000e+00> : vector<8x256xf32>
    %3 = tpu.matmul %0, %2, %cst {dimension_numbers = #tpu.dot_dimension_numbers<[1], [0], [0], [1], [0, 0, 1, 1], [], []>} : vector<8x256xf32>, vector<256x256xf32>, vector<8x256xf32> -> vector<8x256xf32>
    %c0_4 = arith.constant 0 : index
    %4 = memref.load %arg4[%c0_4] : memref<1xf32, #tpu.memory_space<smem>>
    %5 = vector.broadcast %4 : f32 to vector<8x256xf32>
    %6 = arith.addf %3, %5 : vector<8x256xf32>
    %cst_5 = arith.constant 0.000000e+00 : f32
    %7 = vector.broadcast %cst_5 : f32 to vector<8x256xf32>
    %8 = arith.maximumf %6, %7 : vector<8x256xf32>
    %c4 = arith.constant 4 : index
    %9 = memref.load %arg5[%c4] : memref<9xf32, #tpu.memory_space<smem>>
    %10 = vector.broadcast %9 : f32 to vector<8x256xf32>
    %11 = arith.mulf %10, %8 : vector<8x256xf32>
    %c0_6 = arith.constant 0 : index
    %12 = memref.load %arg6[%c0_6] : memref<1xf32, #tpu.memory_space<smem>>
    %13 = vector.broadcast %12 : f32 to vector<8x256xf32>
    %14 = arith.addf %11, %13 : vector<8x256xf32>
    %c17_i32 = arith.constant 17 : i32
    %15 = tpu.dynamic_rotate %8 by %c17_i32 dim 1 : vector<8x256xf32>, i32 -> vector<8x256xf32>
    %c0_7 = arith.constant 0 : index
    %16 = memref.load %arg5[%c0_7] : memref<9xf32, #tpu.memory_space<smem>>
    %17 = vector.broadcast %16 : f32 to vector<8x256xf32>
    %18 = arith.mulf %17, %15 : vector<8x256xf32>
    %c0_8 = arith.constant 0 : index
    %c0_9 = arith.constant 0 : index
    %19 = vector.load %arg3[%c0_8, %c0_9] : memref<8x256xf32, #tpu.memory_space<vmem>>, vector<1x256xf32>
    %20 = vector.broadcast %19 : vector<1x256xf32> to vector<8x256xf32>
    %21 = arith.mulf %18, %20 : vector<8x256xf32>
    %22 = arith.addf %14, %21 : vector<8x256xf32>
    %c16_i32 = arith.constant 16 : i32
    %23 = tpu.dynamic_rotate %8 by %c16_i32 dim 1 : vector<8x256xf32>, i32 -> vector<8x256xf32>
    %c1 = arith.constant 1 : index
    %24 = memref.load %arg5[%c1] : memref<9xf32, #tpu.memory_space<smem>>
    %25 = vector.broadcast %24 : f32 to vector<8x256xf32>
    %26 = arith.mulf %25, %23 : vector<8x256xf32>
    %c1_10 = arith.constant 1 : index
    %c0_11 = arith.constant 0 : index
    %27 = vector.load %arg3[%c1_10, %c0_11] : memref<8x256xf32, #tpu.memory_space<vmem>>, vector<1x256xf32>
    %28 = vector.broadcast %27 : vector<1x256xf32> to vector<8x256xf32>
    %29 = arith.mulf %26, %28 : vector<8x256xf32>
    %30 = arith.addf %22, %29 : vector<8x256xf32>
    %c15_i32 = arith.constant 15 : i32
    %31 = tpu.dynamic_rotate %8 by %c15_i32 dim 1 : vector<8x256xf32>, i32 -> vector<8x256xf32>
    %c2 = arith.constant 2 : index
    %32 = memref.load %arg5[%c2] : memref<9xf32, #tpu.memory_space<smem>>
    %33 = vector.broadcast %32 : f32 to vector<8x256xf32>
    %34 = arith.mulf %33, %31 : vector<8x256xf32>
    %c2_12 = arith.constant 2 : index
    %c0_13 = arith.constant 0 : index
    %35 = vector.load %arg3[%c2_12, %c0_13] : memref<8x256xf32, #tpu.memory_space<vmem>>, vector<1x256xf32>
    %36 = vector.broadcast %35 : vector<1x256xf32> to vector<8x256xf32>
    %37 = arith.mulf %34, %36 : vector<8x256xf32>
    %38 = arith.addf %30, %37 : vector<8x256xf32>
    %c1_i32 = arith.constant 1 : i32
    %39 = tpu.dynamic_rotate %8 by %c1_i32 dim 1 : vector<8x256xf32>, i32 -> vector<8x256xf32>
    %c3 = arith.constant 3 : index
    %40 = memref.load %arg5[%c3] : memref<9xf32, #tpu.memory_space<smem>>
    %41 = vector.broadcast %40 : f32 to vector<8x256xf32>
    %42 = arith.mulf %41, %39 : vector<8x256xf32>
    %c3_14 = arith.constant 3 : index
    %c0_15 = arith.constant 0 : index
    %43 = vector.load %arg3[%c3_14, %c0_15] : memref<8x256xf32, #tpu.memory_space<vmem>>, vector<1x256xf32>
    %44 = vector.broadcast %43 : vector<1x256xf32> to vector<8x256xf32>
    %45 = arith.mulf %42, %44 : vector<8x256xf32>
    %46 = arith.addf %38, %45 : vector<8x256xf32>
    %c255_i32 = arith.constant 255 : i32
    %47 = tpu.dynamic_rotate %8 by %c255_i32 dim 1 : vector<8x256xf32>, i32 -> vector<8x256xf32>
    %c5 = arith.constant 5 : index
    %48 = memref.load %arg5[%c5] : memref<9xf32, #tpu.memory_space<smem>>
    %49 = vector.broadcast %48 : f32 to vector<8x256xf32>
    %50 = arith.mulf %49, %47 : vector<8x256xf32>
    %c4_16 = arith.constant 4 : index
    %c0_17 = arith.constant 0 : index
    %51 = vector.load %arg3[%c4_16, %c0_17] : memref<8x256xf32, #tpu.memory_space<vmem>>, vector<1x256xf32>
    %52 = vector.broadcast %51 : vector<1x256xf32> to vector<8x256xf32>
    %53 = arith.mulf %50, %52 : vector<8x256xf32>
    %54 = arith.addf %46, %53 : vector<8x256xf32>
    %c241_i32 = arith.constant 241 : i32
    %55 = tpu.dynamic_rotate %8 by %c241_i32 dim 1 : vector<8x256xf32>, i32 -> vector<8x256xf32>
    %c6 = arith.constant 6 : index
    %56 = memref.load %arg5[%c6] : memref<9xf32, #tpu.memory_space<smem>>
    %57 = vector.broadcast %56 : f32 to vector<8x256xf32>
    %58 = arith.mulf %57, %55 : vector<8x256xf32>
    %c5_18 = arith.constant 5 : index
    %c0_19 = arith.constant 0 : index
    %59 = vector.load %arg3[%c5_18, %c0_19] : memref<8x256xf32, #tpu.memory_space<vmem>>, vector<1x256xf32>
    %60 = vector.broadcast %59 : vector<1x256xf32> to vector<8x256xf32>
    %61 = arith.mulf %58, %60 : vector<8x256xf32>
    %62 = arith.addf %54, %61 : vector<8x256xf32>
    %c240_i32 = arith.constant 240 : i32
    %63 = tpu.dynamic_rotate %8 by %c240_i32 dim 1 : vector<8x256xf32>, i32 -> vector<8x256xf32>
    %c7 = arith.constant 7 : index
    %64 = memref.load %arg5[%c7] : memref<9xf32, #tpu.memory_space<smem>>
    %65 = vector.broadcast %64 : f32 to vector<8x256xf32>
    %66 = arith.mulf %65, %63 : vector<8x256xf32>
    %c6_20 = arith.constant 6 : index
    %c0_21 = arith.constant 0 : index
    %67 = vector.load %arg3[%c6_20, %c0_21] : memref<8x256xf32, #tpu.memory_space<vmem>>, vector<1x256xf32>
    %68 = vector.broadcast %67 : vector<1x256xf32> to vector<8x256xf32>
    %69 = arith.mulf %66, %68 : vector<8x256xf32>
    %70 = arith.addf %62, %69 : vector<8x256xf32>
    %c239_i32 = arith.constant 239 : i32
    %71 = tpu.dynamic_rotate %8 by %c239_i32 dim 1 : vector<8x256xf32>, i32 -> vector<8x256xf32>
    %c8 = arith.constant 8 : index
    %72 = memref.load %arg5[%c8] : memref<9xf32, #tpu.memory_space<smem>>
    %73 = vector.broadcast %72 : f32 to vector<8x256xf32>
    %74 = arith.mulf %73, %71 : vector<8x256xf32>
    %c7_22 = arith.constant 7 : index
    %c0_23 = arith.constant 0 : index
    %75 = vector.load %arg3[%c7_22, %c0_23] : memref<8x256xf32, #tpu.memory_space<vmem>>, vector<1x256xf32>
    %76 = vector.broadcast %75 : vector<1x256xf32> to vector<8x256xf32>
    %77 = arith.mulf %74, %76 : vector<8x256xf32>
    %78 = arith.addf %70, %77 : vector<8x256xf32>
    %79 = arith.negf %78 : vector<8x256xf32>
    %80 = math.exp %79 : vector<8x256xf32>
    %cst_24 = arith.constant 1.000000e+00 : f32
    %81 = vector.broadcast %cst_24 : f32 to vector<8x256xf32>
    %82 = arith.addf %81, %80 : vector<8x256xf32>
    %83 = arith.divf %81, %82 : vector<8x256xf32>
    %84 = vector.extract_strided_slice %83 {offsets = [0, 0], sizes = [1, 256], strides = [1, 1]} : vector<8x256xf32> to vector<1x256xf32>
    %c0_25 = arith.constant 0 : index
    %c0_26 = arith.constant 0 : index
    %c0_27 = arith.constant 0 : index
    %85 = vector.load %arg1[%c0_25, %c0_26, %c0_27] : memref<1x256x256xf32, #tpu.memory_space<vmem>>, vector<1x256x256xf32>
    %86 = vector.shape_cast %85 : vector<1x256x256xf32> to vector<256x256xf32>
    %87 = vector.broadcast %84 : vector<1x256xf32> to vector<256x256xf32>
    %88 = arith.mulf %86, %87 : vector<256x256xf32>
    %c0_28 = arith.constant 0 : index
    %c0_29 = arith.constant 0 : index
    %c0_30 = arith.constant 0 : index
    %89 = vector.load %arg7[%c0_28, %c0_29, %c0_30] : memref<1x256x256xf32, #tpu.memory_space<vmem>>, vector<1x256x256xf32>
    %90 = vector.shape_cast %89 : vector<1x256x256xf32> to vector<256x256xf32>
    %91 = vector.shape_cast %88 : vector<256x256xf32> to vector<1x256x256xf32>
    tpu.vector_store %arg7[%c0_28, %c0_29, %c0_30], %91 {strides = array<i32>} : memref<1x256x256xf32, #tpu.memory_space<vmem>>, vector<1x256x256xf32>,
    return
  }
  func.func @transform_0(%arg0: i32) -> (i32, i32, i32) {
    %c0_i32 = arith.constant 0 : i32
    %c0_i32_0 = arith.constant 0 : i32
    %c0_i32_1 = arith.constant 0 : i32
    return %arg0, %c0_i32, %c0_i32_0 : i32, i32, i32
  }
  func.func @transform_1(%arg0: i32) -> (i32, i32) {
    %c0_i32 = arith.constant 0 : i32
    %c0_i32_0 = arith.constant 0 : i32
    %c0_i32_1 = arith.constant 0 : i32
    return %c0_i32, %c0_i32_0 : i32, i32
  }
  func.func @transform_2(%arg0: i32) -> (i32, i32) {
    %c0_i32 = arith.constant 0 : i32
    %c0_i32_0 = arith.constant 0 : i32
    %c0_i32_1 = arith.constant 0 : i32
    return %c0_i32, %c0_i32_0 : i32, i32
  }
  func.func @transform_3(%arg0: i32) -> i32 {
    %c0_i32 = arith.constant 0 : i32
    %c0_i32_0 = arith.constant 0 : i32
    return %c0_i32 : i32
  }
  func.func @transform_4(%arg0: i32) -> i32 {
    %c0_i32 = arith.constant 0 : i32
    %c0_i32_0 = arith.constant 0 : i32
    return %c0_i32 : i32
  }
  func.func @transform_5(%arg0: i32) -> i32 {
    %c0_i32 = arith.constant 0 : i32
    %c0_i32_0 = arith.constant 0 : i32
    return %c0_i32 : i32
  }
  func.func @transform_6(%arg0: i32) -> (i32, i32, i32) {
    %c0_i32 = arith.constant 0 : i32
    %c0_i32_0 = arith.constant 0 : i32
    %c0_i32_1 = arith.constant 0 : i32
    return %arg0, %c0_i32, %c0_i32_0 : i32, i32, i32
  }
}

</mosaic_0001>

<llo_original>
// kernel: tpu_custom_call.1
$region0: #{tpu_custom_call.1}
  #allocation0 [shape = 'u32[]', space=smem, size = 0x4, offset = 0x4, fixed_abs, tag = 'smem constant byte address 0x4 - core index']
  #allocation1 [shape = 'u32[72,128]{1,0:T(1,128)}', space=vmem, size = 0x9000, scoped, tag = 'internal scratch']
  #allocation2 [shape = 'f32[1]{0:T(128)S(6)}', space=smem, size = 0x200, scoped, tag = 'scoped memory for tpu_custom_call.1']
  #allocation3 [shape = 'f32[1]{0:T(128)S(6)}', space=smem, size = 0x200, scoped, tag = 'scoped memory for tpu_custom_call.1']
  %s0 = inlined_call_operand.hbm [shape: f32[2,256,256], index: 0, kind: input, shape index: {}]
  %s1 = inlined_call_operand.hbm [shape: f32[8,256], index: 1, kind: input, shape index: {}]
  %s2 = inlined_call_operand.hbm [shape: f32[8,256], index: 2, kind: input, shape index: {}]
  %s3 = inlined_call_operand.<no memory space> [shape: f32[1], index: 3, kind: input, shape index: {}]
  %s4 = inlined_call_operand.vmem [shape: f32[9], index: 4, kind: input, shape index: {}]
  %s5 = inlined_call_operand.<no memory space> [shape: f32[1], index: 5, kind: input, shape index: {}]
  %s6 = inlined_call_operand.hbm [shape: f32[2,256,256], index: 6, kind: output, shape index: {}]
  %s7 = sld [smem:[#allocation0]]
  $region73: #{tpu_custom_call.1} parent=0
    _
  %s9 = ssub.s32 1, %s7
  %s10 = scalar_select 0, %s9, %s7
  %11 = sst [smem:[#allocation2]] %s3
  %12 = sst [smem:[#allocation3]] %s5
  $region1: #{tpu_custom_call.1} parent=0
    #allocation4 [shape = 'u8[524288]{0}', space=vmem, size = 0x80000, scoped, tag = 'input window, operand 0']
    #allocation5 [shape = 's32[2]{0}', space=sflag, size = 0x8, scoped, tag = 'scoped memory for tpu_custom_call.1']
    #allocation6 [shape = 's32[2]{0}', space=sflag, size = 0x8, scoped, tag = 'scoped memory for tpu_custom_call.1']
    #allocation7 [shape = 's32[2]{0}', space=sflag, size = 0x8, scoped, tag = 'scoped memory for tpu_custom_call.1']
    #allocation8 [shape = 'u8[8192]{0}', space=vmem, size = 0x2000, scoped, tag = 'input window, operand 1, single buffered']
    #allocation9 [shape = 's32[1]{0}', space=sflag, size = 0x4, scoped, tag = 'scoped memory for tpu_custom_call.1']
    #allocation10 [shape = 'u8[8192]{0}', space=vmem, size = 0x2000, scoped, tag = 'input window, operand 2, single buffered']
    #allocation11 [shape = 'u8[512]{0}', space=smem, size = 0x200, scoped, tag = 'input window, operand 4, single buffered']
    #allocation12 [shape = 'u8[524288]{0}', space=vmem, size = 0x80000, scoped, tag = 'output window, operand 0']
    %13 = vsyncpa [#allocation5], 0
    %s14 = scalar_lea.sflag [#allocation5], 1
    %15 = vsyncpa %s14, 0
    %16 = vsyncpa [#allocation9], 0
    %17 = vsyncpa [#allocation7], 0
    %18 = vsyncpa [#allocation6], 0
    %s19 = scalar_lea.sflag [#allocation6], 1
    %20 = vsyncpa %s19, 0
    loop: start=0, step=1, limit=4
    $region2: #{tpu_custom_call.1} parent=1 // loop_pre_header
      _
    $region3: #{tpu_custom_call.1} parent=1 // loop_header
      %s22 = sphi 0, %s26
      %p23 = scmp.ge.s32.totalorder %s22, 4
      %s32 = sphi 0, %s34
      %s35 = sphi 0, %s32
      %s36 = sphi 0, %s35
      %s52 = sphi 0, %s36
      %s56 = sphi 0, %s56
      %s58 = sphi 0, %s56
      %s59 = sphi 0, %s58
      %s73 = sphi 0, %s59
      %s77 = sphi 0, %s77
      %s79 = sphi 0, %s77
      %s80 = sphi 0, %s79
      %s94 = sphi 0, %s80
      %s98 = sphi 0, %s98
      %s100 = sphi 0, %s98
      %s101 = sphi 0, %s100
      %s115 = sphi 0, %s101
      %s119 = sphi 0, %s119
      %s121 = sphi 0, %s119
      %s122 = sphi 0, %s121
      %s136 = sphi 0, %s122
      %s140 = sphi 0, %s140
      %s142 = sphi 0, %s140
      %s143 = sphi 0, %s142
      %s157 = sphi 0, %s143
      %s163 = sphi 0, %s165
      %s166 = sphi 0, %s163
      %s167 = sphi 0, %s166
      %s183 = sphi 0, %s167
    $region4: #{tpu_custom_call.1} parent=1 // loop_header_branch
      %25 = sbr.rel (%p23) target = $region8
    $region5: #{tpu_custom_call.1} parent=1 // loop_body
      %s27 = ssub.s32 %s22, 1
      %s28 = ssub.s32 %s22, 2
      %s29 = sadd.s32 %s22, 1
      %s30 = ssub.s32 %s22, %s29
      %p31 = scmp.eq.s32.totalorder %s30, 0
      %s33 = sadd.s32 %s32, 1
      %s34 = scalar_select %p31, %s32, %s33
      %p37 = pneg %p31
      %p38 = scmp.eq.s32.totalorder %s22, 1
      %p39 = por %p37, %p38
      %p40 = scmp.ne.s32.totalorder %s32, %s35
      %p41 = scmp.eq.s32.totalorder %s22, 0
      %p42 = por %p40, %p41
      %p43 = scmp.ne.s32.totalorder %s32, %s35
      %p44 = scmp.eq.s32.totalorder %s27, 1
      %p45 = por %p43, %p44
      %p46 = scmp.ne.s32.totalorder %s35, %s36
      %p47 = scmp.eq.s32.totalorder %s27, 0
      %p48 = por %p46, %p47
      %p49 = scmp.ne.s32.totalorder %s35, %s36
      %p50 = scmp.eq.s32.totalorder %s28, 1
      %p51 = por %p49, %p50
      %p53 = scmp.ne.s32.totalorder %s36, %s52
      %p54 = scmp.eq.s32.totalorder %s28, 0
      %p55 = por %p53, %p54
      %s57 = sadd.s32 %s56, 1
      %p60 = scmp.eq.s32.totalorder %s22, 1
      %p61 = scmp.ne.s32.totalorder %s56, %s58
      %p62 = scmp.eq.s32.totalorder %s22, 0
      %p63 = por %p61, %p62
      %p64 = scmp.ne.s32.totalorder %s56, %s58
      %p65 = scmp.eq.s32.totalorder %s27, 1
      %p66 = por %p64, %p65
      %p67 = scmp.ne.s32.totalorder %s58, %s59
      %p68 = scmp.eq.s32.totalorder %s27, 0
      %p69 = por %p67, %p68
      %p70 = scmp.ne.s32.totalorder %s58, %s59
      %p71 = scmp.eq.s32.totalorder %s28, 1
      %p72 = por %p70, %p71
      %p74 = scmp.ne.s32.totalorder %s59, %s73
      %p75 = scmp.eq.s32.totalorder %s28, 0
      %p76 = por %p74, %p75
      %s78 = sadd.s32 %s77, 1
      %p81 = scmp.eq.s32.totalorder %s22, 1
      %p82 = scmp.ne.s32.totalorder %s77, %s79
      %p83 = scmp.eq.s32.totalorder %s22, 0
      %p84 = por %p82, %p83
      %p85 = scmp.ne.s32.totalorder %s77, %s79
      %p86 = scmp.eq.s32.totalorder %s27, 1
      %p87 = por %p85, %p86
      %p88 = scmp.ne.s32.totalorder %s79, %s80
      %p89 = scmp.eq.s32.totalorder %s27, 0
      %p90 = por %p88, %p89
      %p91 = scmp.ne.s32.totalorder %s79, %s80
      %p92 = scmp.eq.s32.totalorder %s28, 1
      %p93 = por %p91, %p92
      %p95 = scmp.ne.s32.totalorder %s80, %s94
      %p96 = scmp.eq.s32.totalorder %s28, 0
      %p97 = por %p95, %p96
      %s99 = sadd.s32 %s98, 1
      %p102 = scmp.eq.s32.totalorder %s22, 1
      %p103 = scmp.ne.s32.totalorder %s98, %s100
      %p104 = scmp.eq.s32.totalorder %s22, 0
      %p105 = por %p103, %p104
      %p106 = scmp.ne.s32.totalorder %s98, %s100
      %p107 = scmp.eq.s32.totalorder %s27, 1
      %p108 = por %p106, %p107
      %p109 = scmp.ne.s32.totalorder %s100, %s101
      %p110 = scmp.eq.s32.totalorder %s27, 0
      %p111 = por %p109, %p110
      %p112 = scmp.ne.s32.totalorder %s100, %s101
      %p113 = scmp.eq.s32.totalorder %s28, 1
      %p114 = por %p112, %p113
      %p116 = scmp.ne.s32.totalorder %s101, %s115
      %p117 = scmp.eq.s32.totalorder %s28, 0
      %p118 = por %p116, %p117
      %s120 = sadd.s32 %s119, 1
      %p123 = scmp.eq.s32.totalorder %s22, 1
      %p124 = scmp.ne.s32.totalorder %s119, %s121
      %p125 = scmp.eq.s32.totalorder %s22, 0
      %p126 = por %p124, %p125
      %p127 = scmp.ne.s32.totalorder %s119, %s121
      %p128 = scmp.eq.s32.totalorder %s27, 1
      %p129 = por %p127, %p128
      %p130 = scmp.ne.s32.totalorder %s121, %s122
      %p131 = scmp.eq.s32.totalorder %s27, 0
      %p132 = por %p130, %p131
      %p133 = scmp.ne.s32.totalorder %s121, %s122
      %p134 = scmp.eq.s32.totalorder %s28, 1
      %p135 = por %p133, %p134
      %p137 = scmp.ne.s32.totalorder %s122, %s136
      %p138 = scmp.eq.s32.totalorder %s28, 0
      %p139 = por %p137, %p138
      %s141 = sadd.s32 %s140, 1
      %p144 = scmp.eq.s32.totalorder %s22, 1
      %p145 = scmp.ne.s32.totalorder %s140, %s142
      %p146 = scmp.eq.s32.totalorder %s22, 0
      %p147 = por %p145, %p146
      %p148 = scmp.ne.s32.totalorder %s140, %s142
      %p149 = scmp.eq.s32.totalorder %s27, 1
      %p150 = por %p148, %p149
      %p151 = scmp.ne.s32.totalorder %s142, %s143
      %p152 = scmp.eq.s32.totalorder %s27, 0
      %p153 = por %p151, %p152
      %p154 = scmp.ne.s32.totalorder %s142, %s143
      %p155 = scmp.eq.s32.totalorder %s28, 1
      %p156 = por %p154, %p155
      %p158 = scmp.ne.s32.totalorder %s143, %s157
      %p159 = scmp.eq.s32.totalorder %s28, 0
      %p160 = por %p158, %p159
      %s161 = ssub.s32 %s22, %s29
      %p162 = scmp.eq.s32.totalorder %s161, 0
      %s164 = sadd.s32 %s163, 1
      %s165 = scalar_select %p162, %s163, %s164
      %p168 = pneg %p162
      %p169 = scmp.eq.s32.totalorder %s22, 1
      %p170 = por %p168, %p169
      %p171 = scmp.ne.s32.totalorder %s163, %s166
      %p172 = scmp.eq.s32.totalorder %s22, 0
      %p173 = por %p171, %p172
      %p174 = scmp.ne.s32.totalorder %s163, %s166
      %p175 = scmp.eq.s32.totalorder %s27, 1
      %p176 = por %p174, %p175
      %p177 = scmp.ne.s32.totalorder %s166, %s167
      %p178 = scmp.eq.s32.totalorder %s27, 0
      %p179 = por %p177, %p178
      %p180 = scmp.ne.s32.totalorder %s166, %s167
      %p181 = scmp.eq.s32.totalorder %s28, 1
      %p182 = por %p180, %p181
      %p184 = scmp.ne.s32.totalorder %s167, %s183
      %p185 = scmp.eq.s32.totalorder %s28, 0
      %p186 = por %p184, %p185
      %p187 = scmp.le.s32.totalorder 1, %s22
      %p188 = scmp.lt.s32.totalorder %s22, 3
      %p189 = pnand %p187, %p188
      %p190 = pneg %p189
      // Predicated region
      $region9: #{tpu_custom_call.1} parent=5 // pred_check
        _
      $region10: #{tpu_custom_call.1} parent=5 // pred_check_branch
        %192 = sbr.rel (%p189) target = $region12
      $region11: #{tpu_custom_call.1} parent=5 // pred_region
        %s193 = ssub.s32 %s22, 1
        // Predicated region
        $region13: #{tpu_custom_call.1} parent=11 // pred_check
          %p194 = pneg %p69
        $region14: #{tpu_custom_call.1} parent=11 // pred_check_branch
          %196 = sbr.rel (%p194) target = $region16
        $region15: #{tpu_custom_call.1} parent=11 // pred_region
          %198 = vsyncadd [#allocation9], 0
          %s200 = sshll.u32 %s1, 4
          %s201 = int_to_ptr.hbm [resolvable:$true] %s200
          %s202 = sshll.u32 [#allocation8], 4
          %s203 = int_to_ptr.vmem [resolvable:$true] %s202
          %205 = dma.hbm_to_vmem [thread:$0]  %s201, 256, %s203, [#allocation9]
        $region16: #{tpu_custom_call.1} parent=11 // pred_fallthru
          _
        // Predicated region
        $region17: #{tpu_custom_call.1} parent=11 // pred_check
          %p206 = pneg %p90
        $region18: #{tpu_custom_call.1} parent=11 // pred_check_branch
          %208 = sbr.rel (%p206) target = $region20
        $region19: #{tpu_custom_call.1} parent=11 // pred_region
          %210 = vsyncadd [#allocation9], 0
          %s212 = sshll.u32 %s2, 4
          %s213 = int_to_ptr.hbm [resolvable:$true] %s212
          %s214 = sshll.u32 [#allocation10], 4
          %s215 = int_to_ptr.vmem [resolvable:$true] %s214
          %217 = dma.hbm_to_vmem [thread:$0]  %s213, 256, %s215, [#allocation9]
        $region20: #{tpu_custom_call.1} parent=11 // pred_fallthru
          _
        // Predicated region
        $region21: #{tpu_custom_call.1} parent=11 // pred_check
          %p218 = pneg %p111
        $region22: #{tpu_custom_call.1} parent=11 // pred_check_branch
          %220 = sbr.rel (%p218) target = $region24
        $region23: #{tpu_custom_call.1} parent=11 // pred_region
          _
        $region24: #{tpu_custom_call.1} parent=11 // pred_fallthru
          _
        // Predicated region
        $region25: #{tpu_custom_call.1} parent=11 // pred_check
          %p221 = pneg %p132
        $region26: #{tpu_custom_call.1} parent=11 // pred_check_branch
          %223 = sbr.rel (%p221) target = $region28
        $region27: #{tpu_custom_call.1} parent=11 // pred_region
          %225 = vsyncadd [#allocation7], 0
          %s227 = sshll.u32 %s4, 4
          %s228 = int_to_ptr.vmem [resolvable:$true] %s227
          %230 = dma.vmem_to_smem %s228, 16, [#allocation11], [#allocation7]
        $region28: #{tpu_custom_call.1} parent=11 // pred_fallthru
          _
        // Predicated region
        $region29: #{tpu_custom_call.1} parent=11 // pred_check
          %p231 = pneg %p153
        $region30: #{tpu_custom_call.1} parent=11 // pred_check_branch
          %233 = sbr.rel (%p231) target = $region32
        $region31: #{tpu_custom_call.1} parent=11 // pred_region
          _
        $region32: #{tpu_custom_call.1} parent=11 // pred_fallthru
          _
      $region12: #{tpu_custom_call.1} parent=5 // pred_fallthru
        _
      %p234 = scmp.lt.s32.totalorder %s22, 2
      // Predicated region
      $region33: #{tpu_custom_call.1} parent=5 // pred_check
        %p235 = pneg %p234
      $region34: #{tpu_custom_call.1} parent=5 // pred_check_branch
        %237 = sbr.rel (%p235) target = $region36
      $region35: #{tpu_custom_call.1} parent=5 // pred_region
        // Predicated region
        $region37: #{tpu_custom_call.1} parent=35 // pred_check
          %p238 = pneg %p42
        $region38: #{tpu_custom_call.1} parent=35 // pred_check_branch
          %240 = sbr.rel (%p238) target = $region40
        $region39: #{tpu_custom_call.1} parent=35 // pred_region
          %s241 = sand.u32 %s32, 1
          %s242 = scalar_lea.sflag [#allocation5], %s241
          %s243 = sand.u32 %s32, 1
          %s244 = smul.addr %s243, 512
          %s245 = scalar_lea.vmem [#allocation4], %s244
          %247 = vsyncadd %s242, 0
          %s248 = smul.addr %s22, 64
          %s249 = smul.addr %s248, 8
          %s250 = scalar_lea.hbm %s0, %s249
          %s251 = sshll.u32 %s250, 4
          %s252 = int_to_ptr.hbm [resolvable:$true] %s251
          %s253 = sshll.u32 %s245, 4
          %s254 = int_to_ptr.vmem [resolvable:$true] %s253
          %259 = dma.hbm_to_vmem [thread:$0]  %s252, 8192, %s254, %s242, 256, 256, 16
        $region40: #{tpu_custom_call.1} parent=35 // pred_fallthru
          _
      $region36: #{tpu_custom_call.1} parent=5 // pred_fallthru
        _
      %p260 = scmp.le.s32.totalorder 1, %s22
      %p261 = scmp.lt.s32.totalorder %s22, 3
      %p262 = pnand %p260, %p261
      %p263 = pneg %p262
      // Predicated region
      $region41: #{tpu_custom_call.1} parent=5 // pred_check
        _
      $region42: #{tpu_custom_call.1} parent=5 // pred_check_branch
        %265 = sbr.rel (%p262) target = $region44
      $region43: #{tpu_custom_call.1} parent=5 // pred_region
        %s266 = ssub.s32 %s22, 1
        %s267 = sand.u32 %s35, 1
        %s268 = scalar_lea.sflag [#allocation5], %s267
        %s269 = sand.u32 %s35, 1
        %s270 = smul.addr %s269, 512
        %s271 = scalar_lea.vmem [#allocation4], %s270
        // Predicated region
        $region45: #{tpu_custom_call.1} parent=43 // pred_check
          %p272 = pneg %p48
        $region46: #{tpu_custom_call.1} parent=43 // pred_check_branch
          %274 = sbr.rel (%p272) target = $region48
        $region47: #{tpu_custom_call.1} parent=43 // pred_region
          %276 = dma.done %s268, 8192
        $region48: #{tpu_custom_call.1} parent=43 // pred_fallthru
          _
        // Predicated region
        $region49: #{tpu_custom_call.1} parent=43 // pred_check
          %p277 = pneg %p69
        $region50: #{tpu_custom_call.1} parent=43 // pred_check_branch
          %279 = sbr.rel (%p277) target = $region52
        $region51: #{tpu_custom_call.1} parent=43 // pred_region
          %281 = dma.done [#allocation9], 256
        $region52: #{tpu_custom_call.1} parent=43 // pred_fallthru
          _
        // Predicated region
        $region53: #{tpu_custom_call.1} parent=43 // pred_check
          %p282 = pneg %p90
        $region54: #{tpu_custom_call.1} parent=43 // pred_check_branch
          %284 = sbr.rel (%p282) target = $region56
        $region55: #{tpu_custom_call.1} parent=43 // pred_region
          %286 = dma.done [#allocation9], 256
        $region56: #{tpu_custom_call.1} parent=43 // pred_fallthru
          _
        // Predicated region
        $region57: #{tpu_custom_call.1} parent=43 // pred_check
          %p287 = pneg %p132
        $region58: #{tpu_custom_call.1} parent=43 // pred_check_branch
          %289 = sbr.rel (%p287) target = $region60
        $region59: #{tpu_custom_call.1} parent=43 // pred_region
          %291 = dma.done [#allocation7], 16
        $region60: #{tpu_custom_call.1} parent=43 // pred_fallthru
          _
        %292 = sfence
        %s293 = sand.u32 %s35, 1
        %s294 = scalar_lea.sflag [#allocation5], %s293
        %s295 = sand.u32 %s35, 1
        %s296 = smul.addr %s295, 512
        %s297 = scalar_lea.vmem [#allocation4], %s296
        %p298 = pneg %p48
        %p299 = pneg %p45
        %p300 = pneg %p69
        %p301 = pneg %p66
        %p302 = pneg %p90
        %p303 = pneg %p87
        %p304 = pneg %p111
        %p305 = pneg %p108
        %p306 = pneg %p132
        %p307 = pneg %p129
        %p308 = pneg %p153
        %p309 = pneg %p150
        %p310 = pneg %p179
        %p311 = pneg %p176
        %s312 = sand.u32 %s166, 1
        %s313 = scalar_lea.sflag [#allocation6], %s312
        %s314 = sand.u32 %s166, 1
        %s315 = smul.addr %s314, 512
        %s316 = scalar_lea.vmem [#allocation12], %s315
        %v317 = vld [vmem:[#allocation8] sm:$0xff]
        %v318 = vld [vmem:[#allocation8 + $0x8] sm:$0xff]
        %v319 = vld [vmem:[%s271] sm:$0xff]
        %v320 = vld [vmem:[%s271 + $0x8] sm:$0xff]
        %v321 = vld [vmem:[%s271 + $0x10] sm:$0xff]
        %v322 = vld [vmem:[%s271 + $0x18] sm:$0xff]
        %v323 = vld [vmem:[%s271 + $0x20] sm:$0xff]
        %v324 = vld [vmem:[%s271 + $0x28] sm:$0xff]
        %v325 = vld [vmem:[%s271 + $0x30] sm:$0xff]
        %v326 = vld [vmem:[%s271 + $0x38] sm:$0xff]
        %v327 = vld [vmem:[%s271 + $0x40] sm:$0xff]
        %v328 = vld [vmem:[%s271 + $0x48] sm:$0xff]
        %v329 = vld [vmem:[%s271 + $0x50] sm:$0xff]
        %v330 = vld [vmem:[%s271 + $0x58] sm:$0xff]
        %v331 = vld [vmem:[%s271 + $0x60] sm:$0xff]
        %v332 = vld [vmem:[%s271 + $0x68] sm:$0xff]
        %v333 = vld [vmem:[%s271 + $0x70] sm:$0xff]
        %v334 = vld [vmem:[%s271 + $0x78] sm:$0xff]
        %v335 = vld [vmem:[%s271 + $0x80] sm:$0xff]
        %v336 = vld [vmem:[%s271 + $0x88] sm:$0xff]
        %v337 = vld [vmem:[%s271 + $0x90] sm:$0xff]
        %v338 = vld [vmem:[%s271 + $0x98] sm:$0xff]
        %v339 = vld [vmem:[%s271 + $0xa0] sm:$0xff]
        %v340 = vld [vmem:[%s271 + $0xa8] sm:$0xff]
        %v341 = vld [vmem:[%s271 + $0xb0] sm:$0xff]
        %v342 = vld [vmem:[%s271 + $0xb8] sm:$0xff]
        %v343 = vld [vmem:[%s271 + $0xc0] sm:$0xff]
        %v344 = vld [vmem:[%s271 + $0xc8] sm:$0xff]
        %v345 = vld [vmem:[%s271 + $0xd0] sm:$0xff]
        %v346 = vld [vmem:[%s271 + $0xd8] sm:$0xff]
        %v347 = vld [vmem:[%s271 + $0xe0] sm:$0xff]
        %v348 = vld [vmem:[%s271 + $0xe8] sm:$0xff]
        %v349 = vld [vmem:[%s271 + $0xf0] sm:$0xff]
        %v350 = vld [vmem:[%s271 + $0xf8] sm:$0xff]
        %v351 = vld [vmem:[%s271 + $0x100] sm:$0xff]
        %v352 = vld [vmem:[%s271 + $0x108] sm:$0xff]
        %v353 = vld [vmem:[%s271 + $0x110] sm:$0xff]
        %v354 = vld [vmem:[%s271 + $0x118] sm:$0xff]
        %v355 = vld [vmem:[%s271 + $0x120] sm:$0xff]
        %v356 = vld [vmem:[%s271 + $0x128] sm:$0xff]
        %v357 = vld [vmem:[%s271 + $0x130] sm:$0xff]
        %v358 = vld [vmem:[%s271 + $0x138] sm:$0xff]
        %v359 = vld [vmem:[%s271 + $0x140] sm:$0xff]
        %v360 = vld [vmem:[%s271 + $0x148] sm:$0xff]
        %v361 = vld [vmem:[%s271 + $0x150] sm:$0xff]
        %v362 = vld [vmem:[%s271 + $0x158] sm:$0xff]
        %v363 = vld [vmem:[%s271 + $0x160] sm:$0xff]
        %v364 = vld [vmem:[%s271 + $0x168] sm:$0xff]
        %v365 = vld [vmem:[%s271 + $0x170] sm:$0xff]
        %v366 = vld [vmem:[%s271 + $0x178] sm:$0xff]
        %v367 = vld [vmem:[%s271 + $0x180] sm:$0xff]
        %v368 = vld [vmem:[%s271 + $0x188] sm:$0xff]
        %v369 = vld [vmem:[%s271 + $0x190] sm:$0xff]
        %v370 = vld [vmem:[%s271 + $0x198] sm:$0xff]
        %v371 = vld [vmem:[%s271 + $0x1a0] sm:$0xff]
        %v372 = vld [vmem:[%s271 + $0x1a8] sm:$0xff]
        %v373 = vld [vmem:[%s271 + $0x1b0] sm:$0xff]
        %v374 = vld [vmem:[%s271 + $0x1b8] sm:$0xff]
        %v375 = vld [vmem:[%s271 + $0x1c0] sm:$0xff]
        %v376 = vld [vmem:[%s271 + $0x1c8] sm:$0xff]
        %v377 = vld [vmem:[%s271 + $0x1d0] sm:$0xff]
        %v378 = vld [vmem:[%s271 + $0x1d8] sm:$0xff]
        %v379 = vld [vmem:[%s271 + $0x1e0] sm:$0xff]
        %v380 = vld [vmem:[%s271 + $0x1e8] sm:$0xff]
        %v381 = vld [vmem:[%s271 + $0x1f0] sm:$0xff]
        %v382 = vld [vmem:[%s271 + $0x1f8] sm:$0xff]
        %s383 = sld [smem:[#allocation2]]
        %v384 = vstv %s383
        %385 = vmatpush.msra.mxu0 %v349
        %386 = vmatpush.msra.mxu0 %v347
        %387 = vmatpush.msra.mxu0 %v345
        %388 = vmatpush.msra.mxu0 %v343
        %389 = vmatpush.msra.mxu0 %v341
        %390 = vmatpush.msra.mxu0 %v339
        %391 = vmatpush.msra.mxu0 %v337
        %392 = vmatpush.msra.mxu0 %v335
        %393 = vmatpush.msra.mxu0 %v333
        %394 = vmatpush.msra.mxu0 %v331
        %395 = vmatpush.msra.mxu0 %v329
        %396 = vmatpush.msra.mxu0 %v327
        %397 = vmatpush.msra.mxu0 %v325
        %398 = vmatpush.msra.mxu0 %v323
        %399 = vmatpush.msra.mxu0 %v321
        %400 = vmatpush.msra.mxu0 %v319
        %401 = vmatmul.f32.gmra.mxu0 %v317
        %v402 = vpop.f32.mrf.mxu0
        %v403 = vadd.f32 %v384, %v402
        %404 = vdwg.mxu0
        %405 = vmatpush.msra.mxu0 %v381
        %406 = vmatpush.msra.mxu0 %v379
        %407 = vmatpush.msra.mxu0 %v377
        %408 = vmatpush.msra.mxu0 %v375
        %409 = vmatpush.msra.mxu0 %v373
        %410 = vmatpush.msra.mxu0 %v371
        %411 = vmatpush.msra.mxu0 %v369
        %412 = vmatpush.msra.mxu0 %v367
        %413 = vmatpush.msra.mxu0 %v365
        %414 = vmatpush.msra.mxu0 %v363
        %415 = vmatpush.msra.mxu0 %v361
        %416 = vmatpush.msra.mxu0 %v359
        %417 = vmatpush.msra.mxu0 %v357
        %418 = vmatpush.msra.mxu0 %v355
        %419 = vmatpush.msra.mxu0 %v353
        %420 = vmatpush.msra.mxu0 %v351
        %421 = vmatmul.f32.gmra.mxu0 %v318
        %v422 = vpop.f32.mrf.mxu0
        %v423 = vadd.f32 %v403, %v422
        %424 = vdwg.mxu0
        %425 = vmatpush.msra.mxu0 %v350
        %426 = vmatpush.msra.mxu0 %v348
        %427 = vmatpush.msra.mxu0 %v346
        %428 = vmatpush.msra.mxu0 %v344
        %429 = vmatpush.msra.mxu0 %v342
        %430 = vmatpush.msra.mxu0 %v340
        %431 = vmatpush.msra.mxu0 %v338
        %432 = vmatpush.msra.mxu0 %v336
        %433 = vmatpush.msra.mxu0 %v334
        %434 = vmatpush.msra.mxu0 %v332
        %435 = vmatpush.msra.mxu0 %v330
        %436 = vmatpush.msra.mxu0 %v328
        %437 = vmatpush.msra.mxu0 %v326
        %438 = vmatpush.msra.mxu0 %v324
        %439 = vmatpush.msra.mxu0 %v322
        %440 = vmatpush.msra.mxu0 %v320
        %441 = vmatmul.f32.gmra.mxu0 %v317
        %v442 = vpop.f32.mrf.mxu0
        %v443 = vadd.f32 %v384, %v442
        %444 = vdwg.mxu0
        %445 = vmatpush.msra.mxu0 %v382
        %446 = vmatpush.msra.mxu0 %v380
        %447 = vmatpush.msra.mxu0 %v378
        %448 = vmatpush.msra.mxu0 %v376
        %449 = vmatpush.msra.mxu0 %v374
        %450 = vmatpush.msra.mxu0 %v372
        %451 = vmatpush.msra.mxu0 %v370
        %452 = vmatpush.msra.mxu0 %v368
        %453 = vmatpush.msra.mxu0 %v366
        %454 = vmatpush.msra.mxu0 %v364
        %455 = vmatpush.msra.mxu0 %v362
        %456 = vmatpush.msra.mxu0 %v360
        %457 = vmatpush.msra.mxu0 %v358
        %458 = vmatpush.msra.mxu0 %v356
        %459 = vmatpush.msra.mxu0 %v354
        %460 = vmatpush.msra.mxu0 %v352
        %461 = vmatmul.f32.gmra.mxu0 %v318
        %v462 = vpop.f32.mrf.mxu0
        %v463 = vadd.f32 %v443, %v462
        %464 = vdwg.mxu0
        %v465 = vmax.f32 %v423, 0.0
        %v466 = vmax.f32 %v463, 0.0
        %s467 = sld [smem:[#allocation11 + $0x4]]
        %v468 = vstv %s467
        %v469 = vmul.f32 %v468, %v465
        %v470 = vmul.f32 %v468, %v466
        %s471 = sld [smem:[#allocation3]]
        %v472 = vstv %s471
        %v473 = vadd.f32 %v469, %v472
        %v474 = vadd.f32 %v470, %v472
        %475 = vrot.lane.b32.xlu0 %v465, 17
        %v476 = vpop.permute.xlu0 %475
        %477 = vrot.lane.b32.xlu0 %v466, 17
        %v478 = vpop.permute.xlu0 %477
        %v479 = vlaneseq
        %v480 = vand.u32 %v479, 127
        %vm481 = vcmp.lt.s32.totalorder %v480, 17
        %v482 = vsel %vm481, %v476, %v478
        %v483 = vsel %vm481, %v478, %v476
        %s484 = sld [smem:[#allocation11]]
        %v485 = vstv %s484
        %v486 = vmul.f32 %v485, %v483
        %v487 = vmul.f32 %v485, %v482
        %v488 = vld [vmem:[#allocation10] ss:$8 sm:$0x3]
        %v490 = vperm.slane %v488, 0
        %v491 = vperm.slane %v488, 1
        %v494 = vmul.f32 %v486, %v490
        %v495 = vmul.f32 %v487, %v491
        %v496 = vadd.f32 %v473, %v494
        %v497 = vadd.f32 %v474, %v495
        %498 = vrot.lane.b32.xlu0 %v465, 16
        %v499 = vpop.permute.xlu0 %498
        %500 = vrot.lane.b32.xlu0 %v466, 16
        %v501 = vpop.permute.xlu0 %500
        %vm502 = vcmp.lt.s32.totalorder %v480, 16
        %v503 = vsel %vm502, %v499, %v501
        %v504 = vsel %vm502, %v501, %v499
        %s505 = sld [smem:[#allocation11 + $0x1]]
        %v506 = vstv %s505
        %v507 = vmul.f32 %v506, %v504
        %v508 = vmul.f32 %v506, %v503
        %s509 = scalar_lea.vmem [#allocation10], 1
        %v510 = vld [vmem:[%s509] ss:$8 sm:$0x3]
        %v512 = vperm.slane %v510, 0
        %v513 = vperm.slane %v510, 1
        %v516 = vmul.f32 %v507, %v512
        %v517 = vmul.f32 %v508, %v513
        %v518 = vadd.f32 %v496, %v516
        %v519 = vadd.f32 %v497, %v517
        %520 = vrot.lane.b32.xlu0 %v465, 15
        %v521 = vpop.permute.xlu0 %520
        %522 = vrot.lane.b32.xlu0 %v466, 15
        %v523 = vpop.permute.xlu0 %522
        %vm524 = vcmp.lt.s32.totalorder %v480, 15
        %v525 = vsel %vm524, %v521, %v523
        %v526 = vsel %vm524, %v523, %v521
        %s527 = sld [smem:[#allocation11 + $0x2]]
        %v528 = vstv %s527
        %v529 = vmul.f32 %v528, %v526
        %v530 = vmul.f32 %v528, %v525
        %s531 = scalar_lea.vmem [#allocation10], 2
        %v532 = vld [vmem:[%s531] ss:$8 sm:$0x3]
        %v534 = vperm.slane %v532, 0
        %v535 = vperm.slane %v532, 1
        %v538 = vmul.f32 %v529, %v534
        %v539 = vmul.f32 %v530, %v535
        %v540 = vadd.f32 %v518, %v538
        %v541 = vadd.f32 %v519, %v539
        %542 = vrot.lane.b32.xlu0 %v465, 1
        %v543 = vpop.permute.xlu0 %542
        %544 = vrot.lane.b32.xlu0 %v466, 1
        %v545 = vpop.permute.xlu0 %544
        %vm546 = vcmp.lt.s32.totalorder %v480, 1
        %v547 = vsel %vm546, %v543, %v545
        %v548 = vsel %vm546, %v545, %v543
        %s549 = sld [smem:[#allocation11 + $0x3]]
        %v550 = vstv %s549
        %v551 = vmul.f32 %v550, %v548
        %v552 = vmul.f32 %v550, %v547
        %s553 = scalar_lea.vmem [#allocation10], 3
        %v554 = vld [vmem:[%s553] ss:$8 sm:$0x3]
        %v556 = vperm.slane %v554, 0
        %v557 = vperm.slane %v554, 1
        %v560 = vmul.f32 %v551, %v556
        %v561 = vmul.f32 %v552, %v557
        %v562 = vadd.f32 %v540, %v560
        %v563 = vadd.f32 %v541, %v561
        %564 = vrot.lane.b32.xlu0 %v465, 127
        %v565 = vpop.permute.xlu0 %564
        %566 = vrot.lane.b32.xlu0 %v466, 127
        %v567 = vpop.permute.xlu0 %566
        %vm568 = vcmp.lt.s32.totalorder %v480, 127
        %v569 = vsel %vm568, %v565, %v567
        %v570 = vsel %vm568, %v567, %v565
        %s571 = sld [smem:[#allocation11 + $0x5]]
        %v572 = vstv %s571
        %v573 = vmul.f32 %v572, %v569
        %v574 = vmul.f32 %v572, %v570
        %s575 = scalar_lea.vmem [#allocation10], 4
        %v576 = vld [vmem:[%s575] ss:$8 sm:$0x3]
        %v578 = vperm.slane %v576, 0
        %v579 = vperm.slane %v576, 1
        %v582 = vmul.f32 %v573, %v578
        %v583 = vmul.f32 %v574, %v579
        %v584 = vadd.f32 %v562, %v582
        %v585 = vadd.f32 %v563, %v583
        %586 = vrot.lane.b32.xlu0 %v465, 113
        %v587 = vpop.permute.xlu0 %586
        %588 = vrot.lane.b32.xlu0 %v466, 113
        %v589 = vpop.permute.xlu0 %588
        %vm590 = vcmp.lt.s32.totalorder %v480, 113
        %v591 = vsel %vm590, %v587, %v589
        %v592 = vsel %vm590, %v589, %v587
        %s593 = sld [smem:[#allocation11 + $0x6]]
        %v594 = vstv %s593
        %v595 = vmul.f32 %v594, %v591
        %v596 = vmul.f32 %v594, %v592
        %s597 = scalar_lea.vmem [#allocation10], 5
        %v598 = vld [vmem:[%s597] ss:$8 sm:$0x3]
        %v600 = vperm.slane %v598, 0
        %v601 = vperm.slane %v598, 1
        %v604 = vmul.f32 %v595, %v600
        %v605 = vmul.f32 %v596, %v601
        %v606 = vadd.f32 %v584, %v604
        %v607 = vadd.f32 %v585, %v605
        %608 = vrot.lane.b32.xlu0 %v465, 112
        %v609 = vpop.permute.xlu0 %608
        %610 = vrot.lane.b32.xlu0 %v466, 112
        %v611 = vpop.permute.xlu0 %610
        %vm612 = vcmp.lt.s32.totalorder %v480, 112
        %v613 = vsel %vm612, %v609, %v611
        %v614 = vsel %vm612, %v611, %v609
        %s615 = sld [smem:[#allocation11 + $0x7]]
        %v616 = vstv %s615
        %v617 = vmul.f32 %v616, %v613
        %v618 = vmul.f32 %v616, %v614
        %s619 = scalar_lea.vmem [#allocation10], 6
        %v620 = vld [vmem:[%s619] ss:$8 sm:$0x3]
        %v622 = vperm.slane %v620, 0
        %v623 = vperm.slane %v620, 1
        %v626 = vmul.f32 %v617, %v622
        %v627 = vmul.f32 %v618, %v623
        %v628 = vadd.f32 %v606, %v626
        %v629 = vadd.f32 %v607, %v627
        %630 = vrot.lane.b32.xlu0 %v465, 111
        %v631 = vpop.permute.xlu0 %630
        %632 = vrot.lane.b32.xlu0 %v466, 111
        %v633 = vpop.permute.xlu0 %632
        %vm634 = vcmp.lt.s32.totalorder %v480, 111
        %v635 = vsel %vm634, %v631, %v633
        %v636 = vsel %vm634, %v633, %v631
        %s637 = sld [smem:[#allocation11 + $0x8]]
        %v638 = vstv %s637
        %v639 = vmul.f32 %v638, %v635
        %v640 = vmul.f32 %v638, %v636
        %s641 = scalar_lea.vmem [#allocation10], 7
        %v642 = vld [vmem:[%s641] ss:$8 sm:$0x3]
        %v644 = vperm.slane %v642, 0
        %v645 = vperm.slane %v642, 1
        %v648 = vmul.f32 %v639, %v644
        %v649 = vmul.f32 %v640, %v645
        %v650 = vadd.f32 %v628, %v648
        %v651 = vadd.f32 %v629, %v649
        %v652 = vxor.u32 %v650, 2147483648
        %v653 = vxor.u32 %v651, 2147483648
        %v654 = vmul.f32 %v652, 1.442695
        %v655 = vpow.pop %v654
        %v656 = vmul.f32 %v653, 1.442695
        %v657 = vpow.pop %v656
        %v658 = vadd.f32 %v655, 1.0
        %v659 = vadd.f32 %v657, 1.0
        %v660 = vrcp.pop %v658
        %v661 = vmul.f32 %v658, %v660
        %v662 = vsub.f32 1.0, %v661
        %v663 = vmul.f32 %v660, %v662
        %v664 = vadd.f32 %v660, %v663
        %vm665 = vweird.f32 %v658
        %vm666 = vweird.f32 %v660
        %vm667 = vmor %vm665, %vm666
        %v668 = vsel %vm667, %v660, %v664
        %v669 = vand.u32 2147483647, %v658
        %vm670 = vcmp.eq.f32.partialorder %v669, 8.507059e+37
        %v671 = vand.u32 %v658, 2147483648
        %v672 = vor.u32 1.1754944e-38, %v671
        %v673 = vsel %vm670, %v672, %v668
        %v674 = vmul.f32 1.0, %v673
        %v675 = vrcp.pop %v659
        %v676 = vmul.f32 %v659, %v675
        %v677 = vsub.f32 1.0, %v676
        %v678 = vmul.f32 %v675, %v677
        %v679 = vadd.f32 %v675, %v678
        %vm680 = vweird.f32 %v659
        %vm681 = vweird.f32 %v675
        %vm682 = vmor %vm680, %vm681
        %v683 = vsel %vm682, %v675, %v679
        %v684 = vand.u32 2147483647, %v659
        %vm685 = vcmp.eq.f32.partialorder %v684, 8.507059e+37
        %v686 = vand.u32 %v659, 2147483648
        %v687 = vor.u32 1.1754944e-38, %v686
        %v688 = vsel %vm685, %v687, %v683
        %v689 = vmul.f32 1.0, %v688
        %v690 = vperm.slane %v674, 0
        %v691 = vperm.slane %v689, 0
        %v692 = vmul.f32 %v319, %v690
        %v693 = vmul.f32 %v320, %v691
        %v694 = vmul.f32 %v321, %v690
        %v695 = vmul.f32 %v322, %v691
        %v696 = vmul.f32 %v323, %v690
        %v697 = vmul.f32 %v324, %v691
        %v698 = vmul.f32 %v325, %v690
        %v699 = vmul.f32 %v326, %v691
        %v700 = vmul.f32 %v327, %v690
        %v701 = vmul.f32 %v328, %v691
        %v702 = vmul.f32 %v329, %v690
        %v703 = vmul.f32 %v330, %v691
        %v704 = vmul.f32 %v331, %v690
        %v705 = vmul.f32 %v332, %v691
        %v706 = vmul.f32 %v333, %v690
        %v707 = vmul.f32 %v334, %v691
        %v708 = vmul.f32 %v335, %v690
        %v709 = vmul.f32 %v336, %v691
        %v710 = vmul.f32 %v337, %v690
        %v711 = vmul.f32 %v338, %v691
        %v712 = vmul.f32 %v339, %v690
        %v713 = vmul.f32 %v340, %v691
        %v714 = vmul.f32 %v341, %v690
        %v715 = vmul.f32 %v342, %v691
        %v716 = vmul.f32 %v343, %v690
        %v717 = vmul.f32 %v344, %v691
        %v718 = vmul.f32 %v345, %v690
        %v719 = vmul.f32 %v346, %v691
        %v720 = vmul.f32 %v347, %v690
        %v721 = vmul.f32 %v348, %v691
        %v722 = vmul.f32 %v349, %v690
        %v723 = vmul.f32 %v350, %v691
        %v724 = vmul.f32 %v351, %v690
        %v725 = vmul.f32 %v352, %v691
        %v726 = vmul.f32 %v353, %v690
        %v727 = vmul.f32 %v354, %v691
        %v728 = vmul.f32 %v355, %v690
        %v729 = vmul.f32 %v356, %v691
        %v730 = vmul.f32 %v357, %v690
        %v731 = vmul.f32 %v358, %v691
        %v732 = vmul.f32 %v359, %v690
        %v733 = vmul.f32 %v360, %v691
        %v734 = vmul.f32 %v361, %v690
        %v735 = vmul.f32 %v362, %v691
        %v736 = vmul.f32 %v363, %v690
        %v737 = vmul.f32 %v364, %v691
        %v738 = vmul.f32 %v365, %v690
        %v739 = vmul.f32 %v366, %v691
        %v740 = vmul.f32 %v367, %v690
        %v741 = vmul.f32 %v368, %v691
        %v742 = vmul.f32 %v369, %v690
        %v743 = vmul.f32 %v370, %v691
        %v744 = vmul.f32 %v371, %v690
        %v745 = vmul.f32 %v372, %v691
        %v746 = vmul.f32 %v373, %v690
        %v747 = vmul.f32 %v374, %v691
        %v748 = vmul.f32 %v375, %v690
        %v749 = vmul.f32 %v376, %v691
        %v750 = vmul.f32 %v377, %v690
        %v751 = vmul.f32 %v378, %v691
        %v752 = vmul.f32 %v379, %v690
        %v753 = vmul.f32 %v380, %v691
        %v754 = vmul.f32 %v381, %v690
        %v755 = vmul.f32 %v382, %v691
        %756 = vst [vmem:[%s316] sm:$0xff] %v692
        %757 = vst [vmem:[%s316 + $0x8] sm:$0xff] %v693
        %758 = vst [vmem:[%s316 + $0x10] sm:$0xff] %v694
        %759 = vst [vmem:[%s316 + $0x18] sm:$0xff] %v695
        %760 = vst [vmem:[%s316 + $0x20] sm:$0xff] %v696
        %761 = vst [vmem:[%s316 + $0x28] sm:$0xff] %v697
        %762 = vst [vmem:[%s316 + $0x30] sm:$0xff] %v698
        %763 = vst [vmem:[%s316 + $0x38] sm:$0xff] %v699
        %764 = vst [vmem:[%s316 + $0x40] sm:$0xff] %v700
        %765 = vst [vmem:[%s316 + $0x48] sm:$0xff] %v701
        %766 = vst [vmem:[%s316 + $0x50] sm:$0xff] %v702
        %767 = vst [vmem:[%s316 + $0x58] sm:$0xff] %v703
        %768 = vst [vmem:[%s316 + $0x60] sm:$0xff] %v704
        %769 = vst [vmem:[%s316 + $0x68] sm:$0xff] %v705
        %770 = vst [vmem:[%s316 + $0x70] sm:$0xff] %v706
        %771 = vst [vmem:[%s316 + $0x78] sm:$0xff] %v707
        %772 = vst [vmem:[%s316 + $0x80] sm:$0xff] %v708
        %773 = vst [vmem:[%s316 + $0x88] sm:$0xff] %v709
        %774 = vst [vmem:[%s316 + $0x90] sm:$0xff] %v710
        %775 = vst [vmem:[%s316 + $0x98] sm:$0xff] %v711
        %776 = vst [vmem:[%s316 + $0xa0] sm:$0xff] %v712
        %777 = vst [vmem:[%s316 + $0xa8] sm:$0xff] %v713
        %778 = vst [vmem:[%s316 + $0xb0] sm:$0xff] %v714
        %779 = vst [vmem:[%s316 + $0xb8] sm:$0xff] %v715
        %780 = vst [vmem:[%s316 + $0xc0] sm:$0xff] %v716
        %781 = vst [vmem:[%s316 + $0xc8] sm:$0xff] %v717
        %782 = vst [vmem:[%s316 + $0xd0] sm:$0xff] %v718
        %783 = vst [vmem:[%s316 + $0xd8] sm:$0xff] %v719
        %784 = vst [vmem:[%s316 + $0xe0] sm:$0xff] %v720
        %785 = vst [vmem:[%s316 + $0xe8] sm:$0xff] %v721
        %786 = vst [vmem:[%s316 + $0xf0] sm:$0xff] %v722
        %787 = vst [vmem:[%s316 + $0xf8] sm:$0xff] %v723
        %788 = vst [vmem:[%s316 + $0x100] sm:$0xff] %v724
        %789 = vst [vmem:[%s316 + $0x108] sm:$0xff] %v725
        %790 = vst [vmem:[%s316 + $0x110] sm:$0xff] %v726
        %791 = vst [vmem:[%s316 + $0x118] sm:$0xff] %v727
        %792 = vst [vmem:[%s316 + $0x120] sm:$0xff] %v728
        %793 = vst [vmem:[%s316 + $0x128] sm:$0xff] %v729
        %794 = vst [vmem:[%s316 + $0x130] sm:$0xff] %v730
        %795 = vst [vmem:[%s316 + $0x138] sm:$0xff] %v731
        %796 = vst [vmem:[%s316 + $0x140] sm:$0xff] %v732
        %797 = vst [vmem:[%s316 + $0x148] sm:$0xff] %v733
        %798 = vst [vmem:[%s316 + $0x150] sm:$0xff] %v734
        %799 = vst [vmem:[%s316 + $0x158] sm:$0xff] %v735
        %800 = vst [vmem:[%s316 + $0x160] sm:$0xff] %v736
        %801 = vst [vmem:[%s316 + $0x168] sm:$0xff] %v737
        %802 = vst [vmem:[%s316 + $0x170] sm:$0xff] %v738
        %803 = vst [vmem:[%s316 + $0x178] sm:$0xff] %v739
        %804 = vst [vmem:[%s316 + $0x180] sm:$0xff] %v740
        %805 = vst [vmem:[%s316 + $0x188] sm:$0xff] %v741
        %806 = vst [vmem:[%s316 + $0x190] sm:$0xff] %v742
        %807 = vst [vmem:[%s316 + $0x198] sm:$0xff] %v743
        %808 = vst [vmem:[%s316 + $0x1a0] sm:$0xff] %v744
        %809 = vst [vmem:[%s316 + $0x1a8] sm:$0xff] %v745
        %810 = vst [vmem:[%s316 + $0x1b0] sm:$0xff] %v746
        %811 = vst [vmem:[%s316 + $0x1b8] sm:$0xff] %v747
        %812 = vst [vmem:[%s316 + $0x1c0] sm:$0xff] %v748
        %813 = vst [vmem:[%s316 + $0x1c8] sm:$0xff] %v749
        %814 = vst [vmem:[%s316 + $0x1d0] sm:$0xff] %v750
        %815 = vst [vmem:[%s316 + $0x1d8] sm:$0xff] %v751
        %816 = vst [vmem:[%s316 + $0x1e0] sm:$0xff] %v752
        %817 = vst [vmem:[%s316 + $0x1e8] sm:$0xff] %v753
        %818 = vst [vmem:[%s316 + $0x1f0] sm:$0xff] %v754
        %819 = vst [vmem:[%s316 + $0x1f8] sm:$0xff] %v755
        %s820 = sand.u32 %s166, 1
        %s821 = scalar_lea.sflag [#allocation6], %s820
        %s822 = sand.u32 %s166, 1
        %s823 = smul.addr %s822, 512
        %s824 = scalar_lea.vmem [#allocation12], %s823
        // Predicated region
        $region61: #{tpu_custom_call.1} parent=43 // pred_check
          %p825 = pneg %p176
        $region62: #{tpu_custom_call.1} parent=43 // pred_check_branch
          %827 = sbr.rel (%p825) target = $region64
        $region63: #{tpu_custom_call.1} parent=43 // pred_region
          %829 = vsyncadd %s821, 0
          %s830 = smul.addr %s27, 64
          %s831 = smul.addr %s830, 8
          %s832 = scalar_lea.hbm %s6, %s831
          %s833 = sshll.u32 %s824, 4
          %s834 = int_to_ptr.vmem [resolvable:$true] %s833
          %s835 = sshll.u32 %s832, 4
          %s836 = int_to_ptr.hbm [resolvable:$true] %s835
          %841 = dma.vmem_to_hbm [thread:$0]  %s834, 8192, %s836, %s821, 256, 256, 16
        $region64: #{tpu_custom_call.1} parent=43 // pred_fallthru
          _
      $region44: #{tpu_custom_call.1} parent=5 // pred_fallthru
        _
      %p842 = scmp.le.s32.totalorder 2, %s22
      // Predicated region
      $region65: #{tpu_custom_call.1} parent=5 // pred_check
        %p843 = pneg %p842
      $region66: #{tpu_custom_call.1} parent=5 // pred_check_branch
        %845 = sbr.rel (%p843) target = $region68
      $region67: #{tpu_custom_call.1} parent=5 // pred_region
        %s846 = ssub.s32 %s22, 2
        // Predicated region
        $region69: #{tpu_custom_call.1} parent=67 // pred_check
          %p847 = pneg %p182
        $region70: #{tpu_custom_call.1} parent=67 // pred_check_branch
          %849 = sbr.rel (%p847) target = $region72
        $region71: #{tpu_custom_call.1} parent=67 // pred_region
          %s850 = sand.u32 %s167, 1
          %s851 = scalar_lea.sflag [#allocation6], %s850
          %s852 = sand.u32 %s167, 1
          %s853 = smul.addr %s852, 512
          %s854 = scalar_lea.vmem [#allocation12], %s853
          %856 = dma.done %s851, 8192
        $region72: #{tpu_custom_call.1} parent=67 // pred_fallthru
          _
      $region68: #{tpu_custom_call.1} parent=5 // pred_fallthru
        _
    $region6: #{tpu_custom_call.1} parent=1 // loop_footer
      %s26 = sadd.s32 1, %s22
    $region7: #{tpu_custom_call.1} parent=1 // loop_footer_branch
      %21 = sbr.rel target = $region3
    $region8: #{tpu_custom_call.1} parent=1 // loop_exit
      _
    %857 = vsyncpa [#allocation5], 1
    %s858 = scalar_lea.sflag [#allocation5], 1
    %859 = vsyncpa %s858, 1
    %860 = vsyncpa [#allocation9], 1
    %861 = vsyncpa [#allocation6], 1
    %s862 = scalar_lea.sflag [#allocation6], 1
    %863 = vsyncpa %s862, 1
    %864 = vsyncpa [#allocation7], 1
    %s865 = scalar_lea.sflag [#allocation7], 1
    %866 = vsyncpa %s865, 1

</llo_original>
